<compile_context>
chip_gen: v7x
topology: tpu7x:2x2x1
jax: 0.10.0
libtpu: 0.0.40
codegen_flags: <defaults>
</compile_context>

<pallas_src>
import functools

import jax
import jax.numpy as jnp
from jax.experimental import pallas as pl
from jax.experimental.pallas import tpu as pltpu

EPS = 1e-5
NEG_BIG = -1e30
LANE = 128


def _round_up(x, m):
    return (x + m - 1) // m * m


def _vmem_capacity_bytes():
    """Per-core VMEM capacity; conservative fallback if the query is unavailable."""
    try:
        cap = getattr(pltpu.get_tpu_info(), "vmem_capacity_bytes", None)
        if cap:
            return int(cap)
    except Exception:
        pass
    return 64 << 20  # v7x per-TensorCore VMEM (smallest of current generations)


def _batchnorm(x, gamma_row, beta_row):
    """Training-mode BatchNorm1d: biased batch stats, single fused pass.
    gamma folded into the rsqrt scale -> one (N, H) mul + add total."""
    inv_n = 1.0 / x.shape[0]
    mean = jnp.sum(x, axis=0, keepdims=True) * inv_n
    ex2 = jnp.sum(x * x, axis=0, keepdims=True) * inv_n
    var = jnp.maximum(ex2 - mean * mean, 0.0)       # clamp: cancellation-safe
    scale = gamma_row * jax.lax.rsqrt(var + EPS)    # (1, H)
    shift = beta_row - mean * scale                 # (1, H)
    return x * scale + shift


def _log_softmax_rows(logits):
    m = jnp.max(logits, axis=-1, keepdims=True)
    shifted = logits - m
    lse = jnp.log(jnp.sum(jnp.exp(shifted), axis=-1, keepdims=True))
    return shifted - lse


# ----------------------------------------------------------------------------------
# Path A: fully-resident fused kernel (no grid, all weights live in VMEM)
# ----------------------------------------------------------------------------------
def _fused_kernel(n_hidden, x_ref, w_ref, vec_ref, gbf_ref, wf_ref, bf_ref, out_ref):
    h = x_ref[...].astype(jnp.float32)
    for i in range(n_hidden):                        # static unroll; weights resident
        vecs = vec_ref[i]                            # (3, hp): bias / gamma / beta
        hb = _batchnorm(h, vecs[1:2], vecs[2:3])
        y = jnp.dot(hb.astype(jnp.bfloat16), w_ref[i],
                    preferred_element_type=jnp.float32) + vecs[0:1]
        h = jnp.maximum(y, 0.0)                      # ReLU
    gb = gbf_ref[...]                                # (2, hp): gamma / beta
    hb = _batchnorm(h, gb[0:1], gb[1:2])
    logits = jnp.dot(hb.astype(jnp.bfloat16), wf_ref[...],
                     preferred_element_type=jnp.float32) + bf_ref[...]
    # Padded class columns carry a -1e30 bias -> exp underflows to 0 exactly.
    out_ref[...] = _log_softmax_rows(logits).astype(out_ref.dtype)


# ----------------------------------------------------------------------------------
# Path B: layer-streaming kernel (one grid step per layer + head step)
# ----------------------------------------------------------------------------------
def _streaming_kernel(n_steps, x_ref, w_ref, vec_ref, gbf_ref, bf_ref, wf_hbm,
                      out_ref, act_ref, wf_vmem, wf_sem):
    l = pl.program_id(0)
    last = n_steps - 1
    prefetch_step = max(last - 1, 0)

    @pl.when(l == 0)
    def _init():
        act_ref[...] = x_ref[...].astype(jnp.float32)

    # Deferred final-weight fetch: start one step before the head (overlaps the last
    # hidden layer's matmul), wait inside the head.  Keeps it out of the pipeline
    # prologue and out of VMEM during the hidden layers.
    @pl.when(l == prefetch_step)
    def _prefetch_final_w():
        pltpu.make_async_copy(wf_hbm, wf_vmem, wf_sem.at[0]).start()

    @pl.when(l < last)
    def _hidden_layer():
        x = act_ref[...]                             # (N, hp) f32
        vecs = vec_ref[...]                          # (3, hp): bias / gamma / beta
        xb = _batchnorm(x, vecs[1:2], vecs[2:3])
        y = jnp.dot(xb.astype(jnp.bfloat16), w_ref[...],
                    preferred_element_type=jnp.float32) + vecs[0:1]
        act_ref[...] = jnp.maximum(y, 0.0)           # ReLU

    @pl.when(l == last)
    def _head():
        pltpu.make_async_copy(wf_hbm, wf_vmem, wf_sem.at[0]).wait()
        x = act_ref[...]
        gb = gbf_ref[...]                            # (2, hp)
        xb = _batchnorm(x, gb[0:1], gb[1:2])
        logits = jnp.dot(xb.astype(jnp.bfloat16), wf_vmem[...],
                         preferred_element_type=jnp.float32) + bf_ref[...]
        out_ref[...] = _log_softmax_rows(logits).astype(out_ref.dtype)


# ----------------------------------------------------------------------------------
# Parameters / wrapper / reference
# ----------------------------------------------------------------------------------
def init_params(key, hid_dim, num_class, answering_layer_num):
    """Deterministic synthetic parameters matching MLPAnswering.__init__ shapes.
    Linear weights are stored transposed to (in, out) for the kernel."""
    n_hidden = answering_layer_num - 1
    k_w, k_b, k_wf, k_bf = jax.random.split(key, 4)
    scale = 1.0 / jnp.sqrt(hid_dim)
    w_stack = jax.random.uniform(k_w, (n_hidden, hid_dim, hid_dim),
                                 minval=-scale, maxval=scale, dtype=jnp.float32)
    b_stack = jax.random.uniform(k_b, (n_hidden, hid_dim),
                                 minval=-scale, maxval=scale, dtype=jnp.float32)
    w_final = jax.random.uniform(k_wf, (hid_dim, num_class),
                                 minval=-scale, maxval=scale, dtype=jnp.float32)
    b_final = jax.random.uniform(k_bf, (1, num_class),
                                 minval=-scale, maxval=scale, dtype=jnp.float32)
    gamma_stack = jnp.ones((n_hidden, hid_dim), jnp.float32)
    beta_stack = jnp.full((n_hidden, hid_dim), 1e-4, jnp.float32)
    gamma_final = jnp.ones((1, hid_dim), jnp.float32)
    beta_final = jnp.full((1, hid_dim), 1e-4, jnp.float32)
    return dict(w_stack=w_stack, b_stack=b_stack,
                gamma_stack=gamma_stack, beta_stack=beta_stack,
                w_final=w_final, b_final=b_final,
                gamma_final=gamma_final, beta_final=beta_final)


def mlp_answering_forward(x, params, *, force_streaming=False):
    n, hid_dim = x.shape
    n_hidden = params["w_stack"].shape[0]
    num_class = params["w_final"].shape[1]
    hp = _round_up(hid_dim, LANE)          # lane-aligned hidden width
    cp = _round_up(num_class, LANE)        # lane-dense output width
    n_stack = max(n_hidden, 1)
    n_steps = n_hidden + 1                 # hidden layers + final head

    # ---- lane-aligned zero padding (padded feature columns stay inert) ----
    xp = jnp.zeros((n, hp), jnp.float32).at[:, :hid_dim].set(x.astype(jnp.float32))

    w_stack = jnp.zeros((n_stack, hp, hp), jnp.float32)
    w_stack = w_stack.at[:n_hidden, :hid_dim, :hid_dim].set(
        params["w_stack"].astype(jnp.float32)).astype(jnp.bfloat16)

    # Packed per-layer vectors: row 0 = linear bias, row 1 = BN gamma, row 2 = BN beta.
    vec_stack = jnp.zeros((n_stack, 3, hp), jnp.float32)
    vec_stack = vec_stack.at[:n_hidden, 0, :hid_dim].set(params["b_stack"].astype(jnp.float32))
    vec_stack = vec_stack.at[:n_hidden, 1, :hid_dim].set(params["gamma_stack"].astype(jnp.float32))
    vec_stack = vec_stack.at[:n_hidden, 2, :hid_dim].set(params["beta_stack"].astype(jnp.float32))

    gbf = jnp.zeros((2, hp), jnp.float32)
    gbf = gbf.at[0, :hid_dim].set(params["gamma_final"].reshape(-1).astype(jnp.float32))
    gbf = gbf.at[1, :hid_dim].set(params["beta_final"].reshape(-1).astype(jnp.float32))

    w_final = jnp.zeros((hp, cp), jnp.float32).at[:hid_dim, :num_class].set(
        params["w_final"].astype(jnp.float32)).astype(jnp.bfloat16)
    # Padded class columns get a -1e30 bias so log_softmax ignores them exactly.
    b_final = jnp.full((1, cp), NEG_BIG, jnp.float32).at[0, :num_class].set(
        params["b_final"].reshape(-1).astype(jnp.float32))

    cap = _vmem_capacity_bytes()
    usable = max(cap - (16 << 20), 8 << 20)          # leave compiler headroom

    act_bytes = n * hp * 4
    temp_bytes = 4 * n * hp * 4 + 2 * n * cp * 4     # BN / activation / softmax temps

    # ---- path selection: fully-resident fused kernel when it fits comfortably ----
    bytes_resident = (
        n * hp * 4                                   # input
        + n_stack * hp * hp * 2                      # hidden weights (bf16)
        + n_stack * 3 * hp * 4                       # packed bias/gamma/beta
        + 2 * hp * 4 + cp * 4                        # final gamma/beta + bias
        + hp * cp * 2                                # final weight (bf16)
        + n * cp * 4                                 # output
        + temp_bytes
    )
    use_fused = (not force_streaming) and bytes_resident <= int(0.7 * cap)

    if use_fused:
        vmem_limit = int(min(max(int(bytes_resident * 1.5) + (2 << 20), 8 << 20), usable))
        out = pl.pallas_call(
            functools.partial(_fused_kernel, n_hidden),
            out_shape=jax.ShapeDtypeStruct((n, cp), jnp.float32),
            compiler_params=pltpu.CompilerParams(vmem_limit_bytes=vmem_limit),
        )(xp, w_stack, vec_stack, gbf, w_final, b_final)
        return out[:, :num_class]

    # ---- layer-streaming fallback ----
    def stream_map(l):
        # Clamp on the head step so no extra weight tile is fetched.
        return (jnp.minimum(l, n_stack - 1), 0, 0)

    def fixed2(l):
        return (0, 0)

    in_specs = [
        pl.BlockSpec((n, hp), fixed2),                       # x (resident)
        pl.BlockSpec((pl.Squeezed(), hp, hp), stream_map),   # weight tile (double-buffered)
        pl.BlockSpec((pl.Squeezed(), 3, hp), stream_map),    # packed bias/gamma/beta
        pl.BlockSpec((2, hp), fixed2),                       # final BN gamma/beta
        pl.BlockSpec((1, cp), fixed2),                       # final bias
        pl.BlockSpec(memory_space=pl.ANY),                   # final weight stays in HBM
    ]
    out_specs = pl.BlockSpec((n, cp), fixed2)

    # Explicit per-buffer VMEM accounting (streamed blocks double-buffered).
    bytes_stream = (
        2 * hp * hp * 2                # hidden-weight double buffer (bf16)
        + 2 * 3 * hp * 4               # packed-vector double buffer
        + 2 * n * hp * 4               # input block
        + 2 * (2 * hp * 4 + cp * 4)    # final gamma/beta + final bias blocks
        + 2 * n * cp * 4               # output block
        + act_bytes                    # activation carry scratch
        + hp * cp * 2                  # deferred final-weight scratch (bf16)
        + temp_bytes
    )
    vmem_limit = int(min(max(int(bytes_stream * 1.3) + (2 << 20), 8 << 20), usable))
    # NOTE: on v5e/v6e (128 MiB VMEM) pipeline_mode=pl.Buffered(3) on the weight
    # BlockSpec can further smooth DMA-issue latency when per-layer compute is short.

    out = pl.pallas_call(
        functools.partial(_streaming_kernel, n_steps),
        out_shape=jax.ShapeDtypeStruct((n, cp), jnp.float32),
        grid_spec=pltpu.PrefetchScalarGridSpec(
            num_scalar_prefetch=0,
            grid=(n_steps,),
            in_specs=in_specs,
            out_specs=out_specs,
            scratch_shapes=[
                pltpu.VMEM((n, hp), jnp.float32),            # activation carry
                pltpu.VMEM((hp, cp), jnp.bfloat16),          # deferred final weight
                pltpu.SemaphoreType.DMA((1,)),               # its completion semaphore
            ],
        ),
        compiler_params=pltpu.CompilerParams(
            dimension_semantics=("arbitrary",),              # sequential layer dependency
            vmem_limit_bytes=vmem_limit,
        ),
    )(xp, w_stack, vec_stack, gbf, b_final, w_final)

    return out[:, :num_class]


def mlp_answering_ref(x, params):
    """Pure-JAX reference mirroring the module's math (training-mode BN) with the
    same mixed precision as the kernel (bf16 MXU matmuls, f32 everything else)."""
    h = x.astype(jnp.float32)
    n_hidden = params["w_stack"].shape[0]

    def bn(h, gamma, beta):
        mean = jnp.mean(h, axis=0, keepdims=True)
        var = jnp.maximum(jnp.mean(h * h, axis=0, keepdims=True) - mean * mean, 0.0)
        scale = gamma * jax.lax.rsqrt(var + EPS)
        shift = beta - mean * scale
        return h * scale + shift

    for i in range(n_hidden):
        hb = bn(h, params["gamma_stack"][i], params["beta_stack"][i])
        h = jnp.maximum(
            jnp.dot(hb.astype(jnp.bfloat16),
                    params["w_stack"][i].astype(jnp.bfloat16),
                    preferred_element_type=jnp.float32) + params["b_stack"][i],
            0.0)
    hb = bn(h, params["gamma_final"], params["beta_final"])
    logits = jnp.dot(hb.astype(jnp.bfloat16),
                     params["w_final"].astype(jnp.bfloat16),
                     preferred_element_type=jnp.float32) + params["b_final"]
    return jax.nn.log_softmax(logits, axis=-1)


if __name__ == "__main__":
    batch = 8
    hid_dim = 32
    num_class = 10
    answering_layer_num = 3

    key = jax.random.PRNGKey(0)
    k_x, k_p = jax.random.split(key)
    x = jax.random.normal(k_x, (batch, hid_dim), dtype=jnp.float32)
    params = init_params(k_p, hid_dim, num_class, answering_layer_num)

    ref = mlp_answering_ref(x, params)

    # Fast path: all weights resident in VMEM, single fused kernel invocation.
    out_fused = mlp_answering_forward(x, params)
    jax.block_until_ready(out_fused)
    assert out_fused.shape == (batch, num_class)
    assert jnp.allclose(out_fused, ref, atol=2e-3, rtol=2e-3), "fused path mismatch"

    # Layer-streaming path (used when weights don't fit VMEM); exercised explicitly.
    out_stream = mlp_answering_forward(x, params, force_streaming=True)
    jax.block_until_ready(out_stream)
    assert jnp.allclose(out_stream, ref, atol=2e-3, rtol=2e-3), "streaming path mismatch"

    print("KERNEL_OK")
</pallas_src>

<mosaic_0001>
module attributes {stable_mosaic.version = 11 : i64} {
  func.func @_fused_kernel(%arg0: memref<8x128xf32, #tpu.memory_space<vmem>>, %arg1: memref<2x128x128xbf16, #tpu.memory_space<vmem>>, %arg2: memref<2x3x128xf32, #tpu.memory_space<vmem>>, %arg3: memref<2x128xf32, #tpu.memory_space<vmem>>, %arg4: memref<128x128xbf16, #tpu.memory_space<vmem>>, %arg5: memref<1x128xf32, #tpu.memory_space<vmem>>, %arg6: memref<8x128xf32, #tpu.memory_space<vmem>>) attributes {dimension_semantics = [], scalar_prefetch = 0 : i64, scratch_operands = 0 : i64, tpu.core_type = #tpu.core_type<tc>} {
    %c0 = arith.constant 0 : index
    %c0_0 = arith.constant 0 : index
    %0 = vector.load %arg0[%c0, %c0_0] : memref<8x128xf32, #tpu.memory_space<vmem>>, vector<8x128xf32>
    %c0_1 = arith.constant 0 : index
    %c0_2 = arith.constant 0 : index
    %c0_3 = arith.constant 0 : index
    %1 = vector.load %arg2[%c0_1, %c0_2, %c0_3] : memref<2x3x128xf32, #tpu.memory_space<vmem>>, vector<1x3x128xf32>
    %2 = vector.shape_cast %1 : vector<1x3x128xf32> to vector<3x128xf32>
    %3 = vector.extract_strided_slice %2 {offsets = [1, 0], sizes = [1, 128], strides = [1, 1]} : vector<3x128xf32> to vector<1x128xf32>
    %4 = vector.extract_strided_slice %2 {offsets = [2, 0], sizes = [1, 128], strides = [1, 1]} : vector<3x128xf32> to vector<1x128xf32>
    %cst = arith.constant dense<0.000000e+00> : vector<128xf32>
    %5 = vector.multi_reduction <add>, %0, %cst [0] : vector<8x128xf32> to vector<128xf32>
    %6 = vector.shape_cast %5 : vector<128xf32> to vector<1x128xf32>
    %cst_4 = arith.constant 1.250000e-01 : f32
    %7 = vector.broadcast %cst_4 : f32 to vector<1x128xf32>
    %8 = arith.mulf %6, %7 : vector<1x128xf32>
    %9 = arith.mulf %0, %0 : vector<8x128xf32>
    %cst_5 = arith.constant dense<0.000000e+00> : vector<128xf32>
    %10 = vector.multi_reduction <add>, %9, %cst_5 [0] : vector<8x128xf32> to vector<128xf32>
    %11 = vector.shape_cast %10 : vector<128xf32> to vector<1x128xf32>
    %cst_6 = arith.constant 1.250000e-01 : f32
    %12 = vector.broadcast %cst_6 : f32 to vector<1x128xf32>
    %13 = arith.mulf %11, %12 : vector<1x128xf32>
    %14 = arith.mulf %8, %8 : vector<1x128xf32>
    %15 = arith.subf %13, %14 : vector<1x128xf32>
    %cst_7 = arith.constant 0.000000e+00 : f32
    %16 = vector.broadcast %cst_7 : f32 to vector<1x128xf32>
    %17 = arith.maximumf %15, %16 : vector<1x128xf32>
    %cst_8 = arith.constant 9.99999974E-6 : f32
    %18 = vector.broadcast %cst_8 : f32 to vector<1x128xf32>
    %19 = arith.addf %17, %18 : vector<1x128xf32>
    %20 = math.rsqrt %19 : vector<1x128xf32>
    %21 = arith.mulf %3, %20 : vector<1x128xf32>
    %22 = arith.mulf %8, %21 : vector<1x128xf32>
    %23 = arith.subf %4, %22 : vector<1x128xf32>
    %24 = vector.broadcast %21 : vector<1x128xf32> to vector<8x128xf32>
    %25 = arith.mulf %0, %24 : vector<8x128xf32>
    %26 = vector.broadcast %23 : vector<1x128xf32> to vector<8x128xf32>
    %27 = arith.addf %25, %26 : vector<8x128xf32>
    %28 = arith.truncf %27 : vector<8x128xf32> to vector<8x128xbf16>
    %c0_9 = arith.constant 0 : index
    %c0_10 = arith.constant 0 : index
    %c0_11 = arith.constant 0 : index
    %29 = vector.load %arg1[%c0_9, %c0_10, %c0_11] : memref<2x128x128xbf16, #tpu.memory_space<vmem>>, vector<1x128x128xbf16>
    %30 = vector.shape_cast %29 : vector<1x128x128xbf16> to vector<128x128xbf16>
    %cst_12 = arith.constant dense<0.000000e+00> : vector<8x128xf32>
    %31 = tpu.matmul %28, %30, %cst_12 {dimension_numbers = #tpu.dot_dimension_numbers<[1], [0], [0], [1], [0, 0, 1, 1], [], []>} : vector<8x128xbf16>, vector<128x128xbf16>, vector<8x128xf32> -> vector<8x128xf32>
    %32 = vector.extract_strided_slice %2 {offsets = [0, 0], sizes = [1, 128], strides = [1, 1]} : vector<3x128xf32> to vector<1x128xf32>
    %33 = vector.broadcast %32 : vector<1x128xf32> to vector<8x128xf32>
    %34 = arith.addf %31, %33 : vector<8x128xf32>
    %cst_13 = arith.constant 0.000000e+00 : f32
    %35 = vector.broadcast %cst_13 : f32 to vector<8x128xf32>
    %36 = arith.maximumf %34, %35 : vector<8x128xf32>
    %c1 = arith.constant 1 : index
    %c0_14 = arith.constant 0 : index
    %c0_15 = arith.constant 0 : index
    %37 = vector.load %arg2[%c1, %c0_14, %c0_15] : memref<2x3x128xf32, #tpu.memory_space<vmem>>, vector<1x3x128xf32>
    %38 = vector.shape_cast %37 : vector<1x3x128xf32> to vector<3x128xf32>
    %39 = vector.extract_strided_slice %38 {offsets = [1, 0], sizes = [1, 128], strides = [1, 1]} : vector<3x128xf32> to vector<1x128xf32>
    %40 = vector.extract_strided_slice %38 {offsets = [2, 0], sizes = [1, 128], strides = [1, 1]} : vector<3x128xf32> to vector<1x128xf32>
    %cst_16 = arith.constant dense<0.000000e+00> : vector<128xf32>
    %41 = vector.multi_reduction <add>, %36, %cst_16 [0] : vector<8x128xf32> to vector<128xf32>
    %42 = vector.shape_cast %41 : vector<128xf32> to vector<1x128xf32>
    %cst_17 = arith.constant 1.250000e-01 : f32
    %43 = vector.broadcast %cst_17 : f32 to vector<1x128xf32>
    %44 = arith.mulf %42, %43 : vector<1x128xf32>
    %45 = arith.mulf %36, %36 : vector<8x128xf32>
    %cst_18 = arith.constant dense<0.000000e+00> : vector<128xf32>
    %46 = vector.multi_reduction <add>, %45, %cst_18 [0] : vector<8x128xf32> to vector<128xf32>
    %47 = vector.shape_cast %46 : vector<128xf32> to vector<1x128xf32>
    %cst_19 = arith.constant 1.250000e-01 : f32
    %48 = vector.broadcast %cst_19 : f32 to vector<1x128xf32>
    %49 = arith.mulf %47, %48 : vector<1x128xf32>
    %50 = arith.mulf %44, %44 : vector<1x128xf32>
    %51 = arith.subf %49, %50 : vector<1x128xf32>
    %cst_20 = arith.constant 0.000000e+00 : f32
    %52 = vector.broadcast %cst_20 : f32 to vector<1x128xf32>
    %53 = arith.maximumf %51, %52 : vector<1x128xf32>
    %cst_21 = arith.constant 9.99999974E-6 : f32
    %54 = vector.broadcast %cst_21 : f32 to vector<1x128xf32>
    %55 = arith.addf %53, %54 : vector<1x128xf32>
    %56 = math.rsqrt %55 : vector<1x128xf32>
    %57 = arith.mulf %39, %56 : vector<1x128xf32>
    %58 = arith.mulf %44, %57 : vector<1x128xf32>
    %59 = arith.subf %40, %58 : vector<1x128xf32>
    %60 = vector.broadcast %57 : vector<1x128xf32> to vector<8x128xf32>
    %61 = arith.mulf %36, %60 : vector<8x128xf32>
    %62 = vector.broadcast %59 : vector<1x128xf32> to vector<8x128xf32>
    %63 = arith.addf %61, %62 : vector<8x128xf32>
    %64 = arith.truncf %63 : vector<8x128xf32> to vector<8x128xbf16>
    %c1_22 = arith.constant 1 : index
    %c0_23 = arith.constant 0 : index
    %c0_24 = arith.constant 0 : index
    %65 = vector.load %arg1[%c1_22, %c0_23, %c0_24] : memref<2x128x128xbf16, #tpu.memory_space<vmem>>, vector<1x128x128xbf16>
    %66 = vector.shape_cast %65 : vector<1x128x128xbf16> to vector<128x128xbf16>
    %cst_25 = arith.constant dense<0.000000e+00> : vector<8x128xf32>
    %67 = tpu.matmul %64, %66, %cst_25 {dimension_numbers = #tpu.dot_dimension_numbers<[1], [0], [0], [1], [0, 0, 1, 1], [], []>} : vector<8x128xbf16>, vector<128x128xbf16>, vector<8x128xf32> -> vector<8x128xf32>
    %68 = vector.extract_strided_slice %38 {offsets = [0, 0], sizes = [1, 128], strides = [1, 1]} : vector<3x128xf32> to vector<1x128xf32>
    %69 = vector.broadcast %68 : vector<1x128xf32> to vector<8x128xf32>
    %70 = arith.addf %67, %69 : vector<8x128xf32>
    %cst_26 = arith.constant 0.000000e+00 : f32
    %71 = vector.broadcast %cst_26 : f32 to vector<8x128xf32>
    %72 = arith.maximumf %70, %71 : vector<8x128xf32>
    %c0_27 = arith.constant 0 : index
    %c0_28 = arith.constant 0 : index
    %73 = vector.load %arg3[%c0_27, %c0_28] : memref<2x128xf32, #tpu.memory_space<vmem>>, vector<2x128xf32>
    %74 = vector.extract_strided_slice %73 {offsets = [0, 0], sizes = [1, 128], strides = [1, 1]} : vector<2x128xf32> to vector<1x128xf32>
    %75 = vector.extract_strided_slice %73 {offsets = [1, 0], sizes = [1, 128], strides = [1, 1]} : vector<2x128xf32> to vector<1x128xf32>
    %cst_29 = arith.constant dense<0.000000e+00> : vector<128xf32>
    %76 = vector.multi_reduction <add>, %72, %cst_29 [0] : vector<8x128xf32> to vector<128xf32>
    %77 = vector.shape_cast %76 : vector<128xf32> to vector<1x128xf32>
    %cst_30 = arith.constant 1.250000e-01 : f32
    %78 = vector.broadcast %cst_30 : f32 to vector<1x128xf32>
    %79 = arith.mulf %77, %78 : vector<1x128xf32>
    %80 = arith.mulf %72, %72 : vector<8x128xf32>
    %cst_31 = arith.constant dense<0.000000e+00> : vector<128xf32>
    %81 = vector.multi_reduction <add>, %80, %cst_31 [0] : vector<8x128xf32> to vector<128xf32>
    %82 = vector.shape_cast %81 : vector<128xf32> to vector<1x128xf32>
    %cst_32 = arith.constant 1.250000e-01 : f32
    %83 = vector.broadcast %cst_32 : f32 to vector<1x128xf32>
    %84 = arith.mulf %82, %83 : vector<1x128xf32>
    %85 = arith.mulf %79, %79 : vector<1x128xf32>
    %86 = arith.subf %84, %85 : vector<1x128xf32>
    %cst_33 = arith.constant 0.000000e+00 : f32
    %87 = vector.broadcast %cst_33 : f32 to vector<1x128xf32>
    %88 = arith.maximumf %86, %87 : vector<1x128xf32>
    %cst_34 = arith.constant 9.99999974E-6 : f32
    %89 = vector.broadcast %cst_34 : f32 to vector<1x128xf32>
    %90 = arith.addf %88, %89 : vector<1x128xf32>
    %91 = math.rsqrt %90 : vector<1x128xf32>
    %92 = arith.mulf %74, %91 : vector<1x128xf32>
    %93 = arith.mulf %79, %92 : vector<1x128xf32>
    %94 = arith.subf %75, %93 : vector<1x128xf32>
    %95 = vector.broadcast %92 : vector<1x128xf32> to vector<8x128xf32>
    %96 = arith.mulf %72, %95 : vector<8x128xf32>
    %97 = vector.broadcast %94 : vector<1x128xf32> to vector<8x128xf32>
    %98 = arith.addf %96, %97 : vector<8x128xf32>
    %99 = arith.truncf %98 : vector<8x128xf32> to vector<8x128xbf16>
    %c0_35 = arith.constant 0 : index
    %c0_36 = arith.constant 0 : index
    %100 = vector.load %arg4[%c0_35, %c0_36] : memref<128x128xbf16, #tpu.memory_space<vmem>>, vector<128x128xbf16>
    %cst_37 = arith.constant dense<0.000000e+00> : vector<8x128xf32>
    %101 = tpu.matmul %99, %100, %cst_37 {dimension_numbers = #tpu.dot_dimension_numbers<[1], [0], [0], [1], [0, 0, 1, 1], [], []>} : vector<8x128xbf16>, vector<128x128xbf16>, vector<8x128xf32> -> vector<8x128xf32>
    %c0_38 = arith.constant 0 : index
    %c0_39 = arith.constant 0 : index
    %102 = vector.load %arg5[%c0_38, %c0_39] : memref<1x128xf32, #tpu.memory_space<vmem>>, vector<1x128xf32>
    %103 = vector.broadcast %102 : vector<1x128xf32> to vector<8x128xf32>
    %104 = arith.addf %101, %103 : vector<8x128xf32>
    %cst_40 = arith.constant dense<0xFF800000> : vector<8xf32>
    %105 = vector.multi_reduction <maximumf>, %104, %cst_40 [1] : vector<8x128xf32> to vector<8xf32>
    %106 = vector.shape_cast %105 : vector<8xf32> to vector<8x1xf32>
    %107 = vector.broadcast %106 : vector<8x1xf32> to vector<8x128xf32>
    %108 = arith.subf %104, %107 : vector<8x128xf32>
    %109 = math.exp %108 : vector<8x128xf32>
    %cst_41 = arith.constant dense<0.000000e+00> : vector<8xf32>
    %110 = vector.multi_reduction <add>, %109, %cst_41 [1] : vector<8x128xf32> to vector<8xf32>
    %111 = vector.shape_cast %110 : vector<8xf32> to vector<8x1xf32>
    %112 = math.log %111 : vector<8x1xf32>
    %113 = vector.broadcast %112 : vector<8x1xf32> to vector<8x128xf32>
    %114 = arith.subf %108, %113 : vector<8x128xf32>
    %c0_42 = arith.constant 0 : index
    %c0_43 = arith.constant 0 : index
    %115 = vector.load %arg6[%c0_42, %c0_43] : memref<8x128xf32, #tpu.memory_space<vmem>>, vector<8x128xf32>
    tpu.vector_store %arg6[%c0_42, %c0_43], %114 {strides = array<i32>} : memref<8x128xf32, #tpu.memory_space<vmem>>, vector<8x128xf32>,
    return
  }
}

</mosaic_0001>

<llo_original>
// kernel: tpu_custom_call.1
$region0: #{tpu_custom_call.1}
  #allocation0 [shape = 'u32[]', space=smem, size = 0x4, offset = 0x4, fixed_abs, tag = 'smem constant byte address 0x4 - core index']
  #allocation1 [shape = 'u32[144,128]{1,0:T(1,128)}', space=vmem, size = 0x12000, scoped, tag = 'internal scratch']
  %s0 = inlined_call_operand.vmem [shape: f32[8,128], index: 0, kind: input, shape index: {}]
  %s1 = inlined_call_operand.hbm [shape: bf16[2,128,128], index: 1, kind: input, shape index: {}]
  %s2 = inlined_call_operand.vmem [shape: f32[2,3,128], index: 2, kind: input, shape index: {}]
  %s3 = inlined_call_operand.vmem [shape: f32[2,128], index: 3, kind: input, shape index: {}]
  %s4 = inlined_call_operand.hbm [shape: bf16[128,128], index: 4, kind: input, shape index: {}]
  %s5 = inlined_call_operand.vmem [shape: f32[1,128], index: 5, kind: input, shape index: {}]
  %s6 = inlined_call_operand.hbm [shape: f32[8,128], index: 6, kind: output, shape index: {}]
  %s7 = sld [smem:[#allocation0]]
  $region42: #{tpu_custom_call.1} parent=0
    _
  %s9 = ssub.s32 1, %s7
  %s10 = scalar_select 0, %s9, %s7
  $region1: #{tpu_custom_call.1} parent=0
    #allocation2 [shape = 'u8[65536]{0}', space=vmem, size = 0x10000, scoped, tag = 'input window, operand 1, single buffered']
    #allocation3 [shape = 's32[1]{0}', space=sflag, size = 0x4, scoped, tag = 'scoped memory for tpu_custom_call.1']
    #allocation4 [shape = 's32[1]{0}', space=sflag, size = 0x4, scoped, tag = 'scoped memory for tpu_custom_call.1']
    #allocation5 [shape = 'u8[32768]{0}', space=vmem, size = 0x8000, scoped, tag = 'input window, operand 4, single buffered']
    #allocation6 [shape = 's32[1]{0}', space=sflag, size = 0x4, scoped, tag = 'scoped memory for tpu_custom_call.1']
    #allocation7 [shape = 'u8[4096]{0}', space=vmem, size = 0x1000, scoped, tag = 'output window, operand 0, single buffered']
    %11 = vsyncpa [#allocation3], 0
    %12 = vsyncpa [#allocation6], 0
    %13 = vsyncpa [#allocation4], 0
    // Predicated region
    $region2: #{tpu_custom_call.1} parent=1 // pred_check
      _
    $region3: #{tpu_custom_call.1} parent=1 // pred_check_branch
      %15 = sbr.rel (0) target = $region5
    $region4: #{tpu_custom_call.1} parent=1 // pred_region
      _
    $region5: #{tpu_custom_call.1} parent=1 // pred_fallthru
      _
    // Predicated region
    $region6: #{tpu_custom_call.1} parent=1 // pred_check
      _
    $region7: #{tpu_custom_call.1} parent=1 // pred_check_branch
      %17 = sbr.rel (0) target = $region9
    $region8: #{tpu_custom_call.1} parent=1 // pred_region
      %s19 = ssub.s32 2048, 2048
      %20 = vsyncadd [#allocation3], %s19
      %s21 = sshll.u32 [#allocation2], 4
      %s22 = int_to_ptr.vmem [resolvable:$true] %s21
      %27 = dma.hbm_to_vmem [thread:$0]  %s1, 2048, %s22, [#allocation3], 64, 64, 4
    $region9: #{tpu_custom_call.1} parent=1 // pred_fallthru
      _
    // Predicated region
    $region10: #{tpu_custom_call.1} parent=1 // pred_check
      _
    $region11: #{tpu_custom_call.1} parent=1 // pred_check_branch
      %29 = sbr.rel (0) target = $region13
    $region12: #{tpu_custom_call.1} parent=1 // pred_region
      _
    $region13: #{tpu_custom_call.1} parent=1 // pred_fallthru
      _
    // Predicated region
    $region14: #{tpu_custom_call.1} parent=1 // pred_check
      _
    $region15: #{tpu_custom_call.1} parent=1 // pred_check_branch
      %31 = sbr.rel (0) target = $region17
    $region16: #{tpu_custom_call.1} parent=1 // pred_region
      _
    $region17: #{tpu_custom_call.1} parent=1 // pred_fallthru
      _
    // Predicated region
    $region18: #{tpu_custom_call.1} parent=1 // pred_check
      _
    $region19: #{tpu_custom_call.1} parent=1 // pred_check_branch
      %33 = sbr.rel (0) target = $region21
    $region20: #{tpu_custom_call.1} parent=1 // pred_region
      %s35 = ssub.s32 1024, 1024
      %36 = vsyncadd [#allocation6], %s35
      %s37 = sshll.u32 [#allocation5], 4
      %s38 = int_to_ptr.vmem [resolvable:$true] %s37
      %43 = dma.hbm_to_vmem [thread:$0]  %s4, 1024, %s38, [#allocation6], 64, 64, 4
    $region21: #{tpu_custom_call.1} parent=1 // pred_fallthru
      _
    // Predicated region
    $region22: #{tpu_custom_call.1} parent=1 // pred_check
      _
    $region23: #{tpu_custom_call.1} parent=1 // pred_check_branch
      %45 = sbr.rel (0) target = $region25
    $region24: #{tpu_custom_call.1} parent=1 // pred_region
      _
    $region25: #{tpu_custom_call.1} parent=1 // pred_fallthru
      _
    // Predicated region
    $region26: #{tpu_custom_call.1} parent=1 // pred_check
      _
    $region27: #{tpu_custom_call.1} parent=1 // pred_check_branch
      %47 = sbr.rel (0) target = $region29
    $region28: #{tpu_custom_call.1} parent=1 // pred_region
      %48 = dma.done [#allocation3], 2048
    $region29: #{tpu_custom_call.1} parent=1 // pred_fallthru
      _
    // Predicated region
    $region30: #{tpu_custom_call.1} parent=1 // pred_check
      _
    $region31: #{tpu_custom_call.1} parent=1 // pred_check_branch
      %50 = sbr.rel (0) target = $region33
    $region32: #{tpu_custom_call.1} parent=1 // pred_region
      %51 = dma.done [#allocation6], 1024
    $region33: #{tpu_custom_call.1} parent=1 // pred_fallthru
      _
    %v53 = vld [vmem:[%s0] sm:$0xff]
    %v54 = vld [vmem:[%s2] sm:$0x7]
    %v55 = vrot.slane %v53, 4
    %v56 = vadd.f32 %v53, %v55
    %v57 = vrot.slane %v56, 2
    %v58 = vadd.f32 %v56, %v57
    %v59 = vrot.slane %v58, 1
    %v60 = vadd.f32 %v58, %v59
    %v61 = vmul.f32 %v60, 0.125
    %v62 = vmul.f32 %v53, %v53
    %v63 = vrot.slane %v62, 4
    %v64 = vadd.f32 %v62, %v63
    %v65 = vrot.slane %v64, 2
    %v66 = vadd.f32 %v64, %v65
    %v67 = vrot.slane %v66, 1
    %v68 = vadd.f32 %v66, %v67
    %v69 = vmul.f32 %v68, 0.125
    %v70 = vmul.f32 %v61, %v61
    %v71 = vsub.f32 %v69, %v70
    %v72 = vmax.f32 %v71, 0.0
    %v73 = vadd.f32 %v72, 1e-05
    %v74 = vrsqrt.pop %v73
    %v75 = vmul.f32 %v54, %v74
    %v76 = vmul.f32 %v61, %v75
    %v78 = vrot.slane %v76, 7
    %v80 = vsub.f32 %v54, %v78
    %v81 = vlaneseq
    %v82 = vshrl.u32 %v81, 7
    %v83 = vsub.s32 1, %v82
    %v84 = vrot.slane %v75, %v83
    %v85 = vmul.f32 %v53, %v84
    %v86 = vlaneseq
    %v87 = vshrl.u32 %v86, 7
    %v88 = vsub.s32 2, %v87
    %v89 = vrot.slane %v80, %v88
    %v90 = vadd.f32 %v85, %v89
    %v91 = vpack.c.bf16 %v90, %v90
    %v92 = vld [vmem:[#allocation2] sm:$0xf]
    %v93 = vld [vmem:[#allocation2 + $0x4] sm:$0xf]
    %v94 = vld [vmem:[#allocation2 + $0x8] sm:$0xf]
    %v95 = vld [vmem:[#allocation2 + $0xc] sm:$0xf]
    %v96 = vld [vmem:[#allocation2 + $0x10] sm:$0xf]
    %v97 = vld [vmem:[#allocation2 + $0x14] sm:$0xf]
    %v98 = vld [vmem:[#allocation2 + $0x18] sm:$0xf]
    %v99 = vld [vmem:[#allocation2 + $0x1c] sm:$0xf]
    %v100 = vld [vmem:[#allocation2 + $0x20] sm:$0xf]
    %v101 = vld [vmem:[#allocation2 + $0x24] sm:$0xf]
    %v102 = vld [vmem:[#allocation2 + $0x28] sm:$0xf]
    %v103 = vld [vmem:[#allocation2 + $0x2c] sm:$0xf]
    %v104 = vld [vmem:[#allocation2 + $0x30] sm:$0xf]
    %v105 = vld [vmem:[#allocation2 + $0x34] sm:$0xf]
    %v106 = vld [vmem:[#allocation2 + $0x38] sm:$0xf]
    %v107 = vld [vmem:[#allocation2 + $0x3c] sm:$0xf]
    %v108 = vlaneseq
    %v109 = vshrl.u32 %v108, 7
    %v110 = vsub.s32 0, %v109
    %v111 = vrot.slane %v54, %v110
    %v128 = vunpack.c.l.b16 %v92
    %v129 = vunpack.c.l.b16 %v93
    %v130 = vunpack.c.l.b16 %v94
    %v131 = vunpack.c.l.b16 %v95
    %v132 = vunpack.c.l.b16 %v96
    %v133 = vunpack.c.l.b16 %v97
    %v134 = vunpack.c.l.b16 %v98
    %v135 = vunpack.c.l.b16 %v99
    %v136 = vunpack.c.l.b16 %v100
    %v137 = vunpack.c.l.b16 %v101
    %v138 = vunpack.c.l.b16 %v102
    %v139 = vunpack.c.l.b16 %v103
    %v140 = vunpack.c.l.b16 %v104
    %v141 = vunpack.c.l.b16 %v105
    %v142 = vunpack.c.l.b16 %v106
    %v143 = vunpack.c.l.b16 %v107
    %v144 = vpack.c.b16 %v129, %v128
    %v145 = vpack.c.b16 %v131, %v130
    %v146 = vpack.c.b16 %v133, %v132
    %v147 = vpack.c.b16 %v135, %v134
    %v148 = vpack.c.b16 %v137, %v136
    %v149 = vpack.c.b16 %v139, %v138
    %v150 = vpack.c.b16 %v141, %v140
    %v151 = vpack.c.b16 %v143, %v142
    %160 = vmatprep.subr.bf16.mxu0 0
    %161 = vmatpush1.bf16.msra.mxu0 %v144
    %162 = vmatprep.subr.bf16.mxu0 0
    %163 = vmatpush1.bf16.msra.mxu0 %v145
    %164 = vmatprep.subr.bf16.mxu0 0
    %165 = vmatpush1.bf16.msra.mxu0 %v146
    %166 = vmatprep.subr.bf16.mxu0 0
    %167 = vmatpush1.bf16.msra.mxu0 %v147
    %168 = vmatprep.subr.bf16.mxu0 0
    %169 = vmatpush1.bf16.msra.mxu0 %v148
    %170 = vmatprep.subr.bf16.mxu0 0
    %171 = vmatpush1.bf16.msra.mxu0 %v149
    %172 = vmatprep.subr.bf16.mxu0 0
    %173 = vmatpush1.bf16.msra.mxu0 %v150
    %174 = vmatprep.subr.bf16.mxu0 0
    %175 = vmatpush1.bf16.msra.mxu0 %v151
    %176 = vmatprep.subr.bf16.mxu0 0
    %177 = vmatpush1.bf16.msra.mxu0 0
    %178 = vmatprep.subr.bf16.mxu0 0
    %179 = vmatpush1.bf16.msra.mxu0 0
    %180 = vmatprep.subr.bf16.mxu0 0
    %181 = vmatpush1.bf16.msra.mxu0 0
    %182 = vmatprep.subr.bf16.mxu0 0
    %183 = vmatpush1.bf16.msra.mxu0 0
    %184 = vmatprep.subr.bf16.mxu0 0
    %185 = vmatpush1.bf16.msra.mxu0 0
    %186 = vmatprep.subr.bf16.mxu0 0
    %187 = vmatpush1.bf16.msra.mxu0 0
    %188 = vmatprep.subr.bf16.mxu0 0
    %189 = vmatpush1.bf16.msra.mxu0 0
    %190 = vmatprep.subr.bf16.mxu0 0
    %191 = vmatpush1.bf16.msra.mxu0 0
    %192 = vmatprep.mubr.bf16.mxu0 0
    %193 = vmatmul.mubr.bf16.gmra.mrb[0].mxu0 %v91
    %v194 = vpop.f32.mrb[0].mxu0
    %v195 = vadd.f32 %v111, %v194
    %v196 = vpop.f32.mrb[0].mxu0
    %v197 = vpop.f32.mrb[0].mxu0
    %v198 = vpop.f32.mrb[0].mxu0
    %199 = vdwg.mxu0
    %v200 = vmax.f32 %v195, 0.0
    %s201 = scalar_lea.vmem %s2, 4
    %v202 = vld [vmem:[%s201] sm:$0x7]
    %v203 = vrot.slane %v200, 4
    %v204 = vadd.f32 %v200, %v203
    %v205 = vrot.slane %v204, 2
    %v206 = vadd.f32 %v204, %v205
    %v207 = vrot.slane %v206, 1
    %v208 = vadd.f32 %v206, %v207
    %v209 = vmul.f32 %v208, 0.125
    %v210 = vmul.f32 %v200, %v200
    %v211 = vrot.slane %v210, 4
    %v212 = vadd.f32 %v210, %v211
    %v213 = vrot.slane %v212, 2
    %v214 = vadd.f32 %v212, %v213
    %v215 = vrot.slane %v214, 1
    %v216 = vadd.f32 %v214, %v215
    %v217 = vmul.f32 %v216, 0.125
    %v218 = vmul.f32 %v209, %v209
    %v219 = vsub.f32 %v217, %v218
    %v220 = vmax.f32 %v219, 0.0
    %v221 = vadd.f32 %v220, 1e-05
    %v222 = vrsqrt.pop %v221
    %v223 = vmul.f32 %v202, %v222
    %v224 = vmul.f32 %v209, %v223
    %v226 = vrot.slane %v224, 7
    %v228 = vsub.f32 %v202, %v226
    %v229 = vlaneseq
    %v230 = vshrl.u32 %v229, 7
    %v231 = vsub.s32 1, %v230
    %v232 = vrot.slane %v223, %v231
    %v233 = vmul.f32 %v200, %v232
    %v234 = vlaneseq
    %v235 = vshrl.u32 %v234, 7
    %v236 = vsub.s32 2, %v235
    %v237 = vrot.slane %v228, %v236
    %v238 = vadd.f32 %v233, %v237
    %v239 = vpack.c.bf16 %v238, %v238
    %s240 = scalar_lea.vmem [#allocation2], 64
    %v241 = vld [vmem:[%s240] sm:$0xf]
    %v242 = vld [vmem:[%s240 + $0x4] sm:$0xf]
    %v243 = vld [vmem:[%s240 + $0x8] sm:$0xf]
    %v244 = vld [vmem:[%s240 + $0xc] sm:$0xf]
    %v245 = vld [vmem:[%s240 + $0x10] sm:$0xf]
    %v246 = vld [vmem:[%s240 + $0x14] sm:$0xf]
    %v247 = vld [vmem:[%s240 + $0x18] sm:$0xf]
    %v248 = vld [vmem:[%s240 + $0x1c] sm:$0xf]
    %v249 = vld [vmem:[%s240 + $0x20] sm:$0xf]
    %v250 = vld [vmem:[%s240 + $0x24] sm:$0xf]
    %v251 = vld [vmem:[%s240 + $0x28] sm:$0xf]
    %v252 = vld [vmem:[%s240 + $0x2c] sm:$0xf]
    %v253 = vld [vmem:[%s240 + $0x30] sm:$0xf]
    %v254 = vld [vmem:[%s240 + $0x34] sm:$0xf]
    %v255 = vld [vmem:[%s240 + $0x38] sm:$0xf]
    %v256 = vld [vmem:[%s240 + $0x3c] sm:$0xf]
    %v257 = vlaneseq
    %v258 = vshrl.u32 %v257, 7
    %v259 = vsub.s32 0, %v258
    %v260 = vrot.slane %v202, %v259
    %v277 = vunpack.c.l.b16 %v241
    %v278 = vunpack.c.l.b16 %v242
    %v279 = vunpack.c.l.b16 %v243
    %v280 = vunpack.c.l.b16 %v244
    %v281 = vunpack.c.l.b16 %v245
    %v282 = vunpack.c.l.b16 %v246
    %v283 = vunpack.c.l.b16 %v247
    %v284 = vunpack.c.l.b16 %v248
    %v285 = vunpack.c.l.b16 %v249
    %v286 = vunpack.c.l.b16 %v250
    %v287 = vunpack.c.l.b16 %v251
    %v288 = vunpack.c.l.b16 %v252
    %v289 = vunpack.c.l.b16 %v253
    %v290 = vunpack.c.l.b16 %v254
    %v291 = vunpack.c.l.b16 %v255
    %v292 = vunpack.c.l.b16 %v256
    %v293 = vpack.c.b16 %v278, %v277
    %v294 = vpack.c.b16 %v280, %v279
    %v295 = vpack.c.b16 %v282, %v281
    %v296 = vpack.c.b16 %v284, %v283
    %v297 = vpack.c.b16 %v286, %v285
    %v298 = vpack.c.b16 %v288, %v287
    %v299 = vpack.c.b16 %v290, %v289
    %v300 = vpack.c.b16 %v292, %v291
    %309 = vmatprep.subr.bf16.mxu0 0
    %310 = vmatpush1.bf16.msra.mxu0 %v293
    %311 = vmatprep.subr.bf16.mxu0 0
    %312 = vmatpush1.bf16.msra.mxu0 %v294
    %313 = vmatprep.subr.bf16.mxu0 0
    %314 = vmatpush1.bf16.msra.mxu0 %v295
    %315 = vmatprep.subr.bf16.mxu0 0
    %316 = vmatpush1.bf16.msra.mxu0 %v296
    %317 = vmatprep.subr.bf16.mxu0 0
    %318 = vmatpush1.bf16.msra.mxu0 %v297
    %319 = vmatprep.subr.bf16.mxu0 0
    %320 = vmatpush1.bf16.msra.mxu0 %v298
    %321 = vmatprep.subr.bf16.mxu0 0
    %322 = vmatpush1.bf16.msra.mxu0 %v299
    %323 = vmatprep.subr.bf16.mxu0 0
    %324 = vmatpush1.bf16.msra.mxu0 %v300
    %325 = vmatprep.subr.bf16.mxu0 0
    %326 = vmatpush1.bf16.msra.mxu0 0
    %327 = vmatprep.subr.bf16.mxu0 0
    %328 = vmatpush1.bf16.msra.mxu0 0
    %329 = vmatprep.subr.bf16.mxu0 0
    %330 = vmatpush1.bf16.msra.mxu0 0
    %331 = vmatprep.subr.bf16.mxu0 0
    %332 = vmatpush1.bf16.msra.mxu0 0
    %333 = vmatprep.subr.bf16.mxu0 0
    %334 = vmatpush1.bf16.msra.mxu0 0
    %335 = vmatprep.subr.bf16.mxu0 0
    %336 = vmatpush1.bf16.msra.mxu0 0
    %337 = vmatprep.subr.bf16.mxu0 0
    %338 = vmatpush1.bf16.msra.mxu0 0
    %339 = vmatprep.subr.bf16.mxu0 0
    %340 = vmatpush1.bf16.msra.mxu0 0
    %341 = vmatprep.mubr.bf16.mxu0 0
    %342 = vmatmul.mubr.bf16.gmra.mrb[0].mxu0 %v239
    %v343 = vpop.f32.mrb[0].mxu0
    %v344 = vadd.f32 %v260, %v343
    %v345 = vpop.f32.mrb[0].mxu0
    %v346 = vpop.f32.mrb[0].mxu0
    %v347 = vpop.f32.mrb[0].mxu0
    %348 = vdwg.mxu0
    %v349 = vmax.f32 %v344, 0.0
    %v350 = vld [vmem:[%s3] sm:$0x3]
    %v351 = vrot.slane %v349, 4
    %v352 = vadd.f32 %v349, %v351
    %v353 = vrot.slane %v352, 2
    %v354 = vadd.f32 %v352, %v353
    %v355 = vrot.slane %v354, 1
    %v356 = vadd.f32 %v354, %v355
    %v357 = vmul.f32 %v356, 0.125
    %v358 = vmul.f32 %v349, %v349
    %v359 = vrot.slane %v358, 4
    %v360 = vadd.f32 %v358, %v359
    %v361 = vrot.slane %v360, 2
    %v362 = vadd.f32 %v360, %v361
    %v363 = vrot.slane %v362, 1
    %v364 = vadd.f32 %v362, %v363
    %v365 = vmul.f32 %v364, 0.125
    %v366 = vmul.f32 %v357, %v357
    %v367 = vsub.f32 %v365, %v366
    %v368 = vmax.f32 %v367, 0.0
    %v369 = vadd.f32 %v368, 1e-05
    %v370 = vrsqrt.pop %v369
    %v371 = vmul.f32 %v350, %v370
    %v372 = vmul.f32 %v357, %v371
    %v374 = vrot.slane %v372, 7
    %v376 = vsub.f32 %v350, %v374
    %v377 = vlaneseq
    %v378 = vshrl.u32 %v377, 7
    %v379 = vsub.s32 0, %v378
    %v380 = vrot.slane %v371, %v379
    %v381 = vmul.f32 %v349, %v380
    %v382 = vlaneseq
    %v383 = vshrl.u32 %v382, 7
    %v384 = vsub.s32 1, %v383
    %v385 = vrot.slane %v376, %v384
    %v386 = vadd.f32 %v381, %v385
    %v387 = vpack.c.bf16 %v386, %v386
    %v388 = vld [vmem:[#allocation5] sm:$0xf]
    %v389 = vld [vmem:[#allocation5 + $0x4] sm:$0xf]
    %v390 = vld [vmem:[#allocation5 + $0x8] sm:$0xf]
    %v391 = vld [vmem:[#allocation5 + $0xc] sm:$0xf]
    %v392 = vld [vmem:[#allocation5 + $0x10] sm:$0xf]
    %v393 = vld [vmem:[#allocation5 + $0x14] sm:$0xf]
    %v394 = vld [vmem:[#allocation5 + $0x18] sm:$0xf]
    %v395 = vld [vmem:[#allocation5 + $0x1c] sm:$0xf]
    %v396 = vld [vmem:[#allocation5 + $0x20] sm:$0xf]
    %v397 = vld [vmem:[#allocation5 + $0x24] sm:$0xf]
    %v398 = vld [vmem:[#allocation5 + $0x28] sm:$0xf]
    %v399 = vld [vmem:[#allocation5 + $0x2c] sm:$0xf]
    %v400 = vld [vmem:[#allocation5 + $0x30] sm:$0xf]
    %v401 = vld [vmem:[#allocation5 + $0x34] sm:$0xf]
    %v402 = vld [vmem:[#allocation5 + $0x38] sm:$0xf]
    %v403 = vld [vmem:[#allocation5 + $0x3c] sm:$0xf]
    %v404 = vld [vmem:[%s5] sm:$0x1]
    %v406 = vlaneseq
    %v407 = vshrl.u32 %v406, 7
    %v408 = vsub.s32 0, %v407
    %v409 = vrot.slane %v404, %v408
    %v427 = vunpack.c.l.b16 %v388
    %v428 = vunpack.c.l.b16 %v389
    %v429 = vunpack.c.l.b16 %v390
    %v430 = vunpack.c.l.b16 %v391
    %v431 = vunpack.c.l.b16 %v392
    %v432 = vunpack.c.l.b16 %v393
    %v433 = vunpack.c.l.b16 %v394
    %v434 = vunpack.c.l.b16 %v395
    %v435 = vunpack.c.l.b16 %v396
    %v436 = vunpack.c.l.b16 %v397
    %v437 = vunpack.c.l.b16 %v398
    %v438 = vunpack.c.l.b16 %v399
    %v439 = vunpack.c.l.b16 %v400
    %v440 = vunpack.c.l.b16 %v401
    %v441 = vunpack.c.l.b16 %v402
    %v442 = vunpack.c.l.b16 %v403
    %v443 = vpack.c.b16 %v428, %v427
    %v444 = vpack.c.b16 %v430, %v429
    %v445 = vpack.c.b16 %v432, %v431
    %v446 = vpack.c.b16 %v434, %v433
    %v447 = vpack.c.b16 %v436, %v435
    %v448 = vpack.c.b16 %v438, %v437
    %v449 = vpack.c.b16 %v440, %v439
    %v450 = vpack.c.b16 %v442, %v441
    %459 = vmatprep.subr.bf16.mxu0 0
    %460 = vmatpush1.bf16.msra.mxu0 %v443
    %461 = vmatprep.subr.bf16.mxu0 0
    %462 = vmatpush1.bf16.msra.mxu0 %v444
    %463 = vmatprep.subr.bf16.mxu0 0
    %464 = vmatpush1.bf16.msra.mxu0 %v445
    %465 = vmatprep.subr.bf16.mxu0 0
    %466 = vmatpush1.bf16.msra.mxu0 %v446
    %467 = vmatprep.subr.bf16.mxu0 0
    %468 = vmatpush1.bf16.msra.mxu0 %v447
    %469 = vmatprep.subr.bf16.mxu0 0
    %470 = vmatpush1.bf16.msra.mxu0 %v448
    %471 = vmatprep.subr.bf16.mxu0 0
    %472 = vmatpush1.bf16.msra.mxu0 %v449
    %473 = vmatprep.subr.bf16.mxu0 0
    %474 = vmatpush1.bf16.msra.mxu0 %v450
    %475 = vmatprep.subr.bf16.mxu0 0
    %476 = vmatpush1.bf16.msra.mxu0 0
    %477 = vmatprep.subr.bf16.mxu0 0
    %478 = vmatpush1.bf16.msra.mxu0 0
    %479 = vmatprep.subr.bf16.mxu0 0
    %480 = vmatpush1.bf16.msra.mxu0 0
    %481 = vmatprep.subr.bf16.mxu0 0
    %482 = vmatpush1.bf16.msra.mxu0 0
    %483 = vmatprep.subr.bf16.mxu0 0
    %484 = vmatpush1.bf16.msra.mxu0 0
    %485 = vmatprep.subr.bf16.mxu0 0
    %486 = vmatpush1.bf16.msra.mxu0 0
    %487 = vmatprep.subr.bf16.mxu0 0
    %488 = vmatpush1.bf16.msra.mxu0 0
    %489 = vmatprep.subr.bf16.mxu0 0
    %490 = vmatpush1.bf16.msra.mxu0 0
    %491 = vmatprep.mubr.bf16.mxu0 0
    %492 = vmatmul.mubr.bf16.gmra.mrb[0].mxu0 %v387
    %v493 = vpop.f32.mrb[0].mxu0
    %v494 = vadd.f32 %v409, %v493
    %v495 = vpop.f32.mrb[0].mxu0
    %v496 = vpop.f32.mrb[0].mxu0
    %v497 = vpop.f32.mrb[0].mxu0
    %498 = vdwg.mxu0
    %499 = vmax.xlane.f32.xlu0 %v494
    %v500 = vpop.xlane.xlu0 %499
    %v501 = vsub.f32 %v494, %v500
    %v502 = vmul.f32 %v501, 1.442695
    %v503 = vpow.pop %v502
    %504 = vadd.xlane.f32.xlu0 %v503
    %v505 = vpop.xlane.xlu0 %504
    %v506 = vlog2.pop %v505
    %v507 = vmul.f32 %v506, 0.6931472
    %v508 = vsub.f32 %v501, %v507
    %509 = vst [vmem:[#allocation7] sm:$0xff] %v508
    // Predicated region
    $region34: #{tpu_custom_call.1} parent=1 // pred_check
      _
    $region35: #{tpu_custom_call.1} parent=1 // pred_check_branch
      %511 = sbr.rel (0) target = $region37
    $region36: #{tpu_custom_call.1} parent=1 // pred_region
      %s513 = ssub.s32 128, 128
      %514 = vsyncadd [#allocation4], %s513
      %s516 = sshll.u32 [#allocation7], 4
      %s517 = int_to_ptr.vmem [resolvable:$true] %s516
      %519 = dma.vmem_to_hbm [thread:$0]  %s517, 128, %s6, [#allocation4]
    $region37: #{tpu_custom_call.1} parent=1 // pred_fallthru
      _
    // Predicated region
    $region38: #{tpu_custom_call.1} parent=1 // pred_check
      _
    $region39: #{tpu_custom_call.1} parent=1 // pred_check_branch
      %521 = sbr.rel (0) target = $region41
    $region40: #{tpu_custom_call.1} parent=1 // pred_region
      %522 = dma.done [#allocation4], 128
    $region41: #{tpu_custom_call.1} parent=1 // pred_fallthru
      _
    %523 = vsyncpa [#allocation3], 1
    %524 = vsyncpa [#allocation6], 1
    %525 = vsyncpa [#allocation4], 1

</llo_original>
